<compile_context>
chip_gen: v5e
topology: v5e:2x2
jax: 0.10.0
libtpu: 0.0.40
codegen_flags: <defaults>
</compile_context>

<pallas_src>
import functools
import math

import jax
import jax.numpy as jnp
from jax.experimental import pallas as pl
from jax.experimental.pallas import tpu as pltpu


# ----------------------------------------------------------------------------
# Kernel body
# ----------------------------------------------------------------------------
def _random_layer_kernel(*refs, num_inputs, inv_scale):
    """refs = (x_0, ..., x_{N-1}, r_0, ..., r_{N-1}, out)."""
    x_refs = refs[:num_inputs]
    r_refs = refs[num_inputs:2 * num_inputs]
    o_ref = refs[2 * num_inputs]

    # Only the first product is scaled (matches the PyTorch reference: just
    # return_list[0] is divided before the chained multiplies).  All matmuls
    # accumulate in f32 and the elementwise chain stays f32 (v5e has no bf16
    # VPU).
    acc = jnp.dot(x_refs[0][...], r_refs[0][...],
                  preferred_element_type=jnp.float32) * inv_scale
    for i in range(1, num_inputs):
        acc = acc * jnp.dot(x_refs[i][...], r_refs[i][...],
                            preferred_element_type=jnp.float32)
    o_ref[...] = acc.astype(o_ref.dtype)


# ----------------------------------------------------------------------------
# Helpers
# ----------------------------------------------------------------------------
def _vmem_capacity_bytes():
    """Physical VMEM of the current part; conservative fallback (v7x per-TC)."""
    try:
        cap = getattr(pltpu.get_tpu_info(), "vmem_capacity_bytes", None)
        if cap:
            return int(cap)
    except Exception:
        pass
    return 64 * 1024 * 1024


def _pick_tile(total, max_tile, quantum):
    """Tile size <= max_tile, multiple of `quantum` (or the full dim).

    Prefers an exact divisor of `total`; otherwise returns the largest quantum
    multiple within budget and the caller pads `total` up to a multiple of it.
    """
    if total <= max_tile:
        return total
    best = max((min(total, max_tile) // quantum) * quantum, quantum)
    t = best
    while t >= quantum:
        if total % t == 0:
            return t
        t -= quantum
    return best  # no exact divisor; caller pads


def prepare_random_matrices(random_matrices, dtype=None):
    """One-time conversion of the random matrices (call once, not per forward).

    Use jnp.bfloat16 on any generation; on v7x fp8 (e4m3) is also MXU-native.
    # TODO(synk): int8-weight path for v5e/v6e needs a dequant-in-kernel step;
    # not implemented here.
    """
    if dtype is None:
        return [jnp.asarray(r) for r in random_matrices]
    return [jnp.asarray(r).astype(dtype) for r in random_matrices]


# ----------------------------------------------------------------------------
# Forward
# ----------------------------------------------------------------------------
def random_layer_forward(input_list, random_matrices, output_dim, *,
                         inputs_dtype=None, out_dtype=jnp.float32,
                         tile_d=None, tile_b=None, vmem_budget_bytes=None):
    """Pallas implementation of RandomLayer.forward.

    input_list[i]:       [B, d_i]
    random_matrices[i]:  [d_i, output_dim]   (pre-cast once with
                                              prepare_random_matrices if you
                                              want low-precision weights)
    returns:             [B, output_dim] `out_dtype`
    """
    num_inputs = len(input_list)
    assert num_inputs == len(random_matrices) and num_inputs >= 1
    B = int(input_list[0].shape[0])
    d_list = [int(x.shape[1]) for x in input_list]
    sum_d = sum(d_list)
    output_dim = int(output_dim)

    # Optional input-side cast (small: B x d_i); weights are NOT cast here.
    if inputs_dtype is not None:
        input_list = [x.astype(inputs_dtype) for x in input_list]

    x_bytes = jnp.dtype(input_list[0].dtype).itemsize
    w_bytes = jnp.dtype(random_matrices[0].dtype).itemsize
    o_bytes = jnp.dtype(out_dtype).itemsize

    inv_scale = 1.0 / math.pow(float(output_dim), 1.0 / num_inputs)
    kernel = functools.partial(
        _random_layer_kernel, num_inputs=num_inputs, inv_scale=inv_scale)

    x_total = sum(B * d * x_bytes for d in d_list)
    w_total = sum(d * output_dim * w_bytes for d in d_list)
    o_total = B * output_dim * o_bytes
    total_bytes = x_total + w_total + o_total
    flops = 2 * B * output_dim * sum_d + num_inputs * B * output_dim
    cost = pl.CostEstimate(flops=int(flops), transcendentals=0,
                           bytes_accessed=int(total_bytes))

    vmem_cap = _vmem_capacity_bytes()
    if vmem_budget_bytes is None:
        # ~64 MiB on 128 MiB-VMEM parts (v5e/v6e), ~32 MiB on v7x (64 MiB/TC).
        vmem_budget_bytes = vmem_cap // 2

    # ---------------- Fast path: no grid, everything resident in VMEM. -------
    # No double buffering is needed, so roughly half the physical VMEM is
    # usable; include the in-kernel f32 dot temporaries in the estimate.
    resident_bytes = total_bytes + 2 * B * output_dim * 4
    if tile_d is None and tile_b is None and resident_bytes <= vmem_cap // 2:
        vmem_spec = pl.BlockSpec(memory_space=pltpu.MemorySpace.VMEM)
        limit = int(min(vmem_cap, max(32 * 1024 * 1024, 2 * resident_bytes)))
        return pl.pallas_call(
            kernel,
            out_shape=jax.ShapeDtypeStruct((B, output_dim), out_dtype),
            in_specs=[vmem_spec] * (2 * num_inputs),
            out_specs=vmem_spec,
            compiler_params=pltpu.CompilerParams(vmem_limit_bytes=limit),
            cost_estimate=cost,
        )(*input_list, *random_matrices)

    # ---------------- Tiled path. --------------------------------------------
    # Tile sizes (lane-dense output tiles up to 1024 wide).
    if tile_d is None:
        # Keep the (double-buffered) resident weight tiles within ~half the
        # budget so x / out / temporaries fit too.
        d_cap = ((vmem_budget_bytes // 2) // max(2 * sum_d * w_bytes, 1))
        d_cap = max(128, (d_cap // 128) * 128)
        tile_d = _pick_tile(output_dim, min(1024, d_cap), 128)
    if tile_b is None:
        # Budget (double-buffer aware) per batch row:
        #   2*(x blocks + out block) + (N+1) f32 dot temporaries.
        fixed = 2 * tile_d * sum_d * w_bytes
        per_row = (2 * (sum_d * x_bytes + tile_d * o_bytes)
                   + (num_inputs + 1) * tile_d * 4)
        max_rows = (vmem_budget_bytes - fixed) // max(per_row, 1)
        max_rows = int(min(max(max_rows, 16), 1024))
        # Prefer full 128-row MXU passes when batch and budget allow.
        b_quantum = 128 if (B >= 128 and max_rows >= 128) else \
            (8 if x_bytes >= 4 else 16)
        tile_b = _pick_tile(B, min(B, max_rows), b_quantum)

    # Pad awkward shapes up to the tile quantum instead of blowing the budget.
    pad_b = (-B) % tile_b
    pad_d = (-output_dim) % tile_d
    if pad_b:
        input_list = [jnp.pad(x, ((0, pad_b), (0, 0))) for x in input_list]
    if pad_d:
        # TODO(synk): this re-materializes the weights for non-128-multiple
        # output_dim; prefer output_dim that is a multiple of 128.
        random_matrices = [jnp.pad(r, ((0, 0), (0, pad_d)))
                           for r in random_matrices]
    Bp, Dp = B + pad_b, output_dim + pad_d
    n_b, n_d = Bp // tile_b, Dp // tile_d

    # Residency follows the larger operand: whichever operand set is bigger is
    # indexed only by the OUTER grid axis, so its blocks stay resident and are
    # DMA'd from HBM exactly once; the smaller operand re-streams.
    weights_resident = w_total >= x_total
    if weights_resident:
        grid = (n_d, n_b)                                   # batch innermost
        x_specs = [pl.BlockSpec((tile_b, d), lambda j, b: (b, 0))
                   for d in d_list]
        r_specs = [pl.BlockSpec((d, tile_d), lambda j, b: (0, j))
                   for d in d_list]
        out_spec = pl.BlockSpec((tile_b, tile_d), lambda j, b: (b, j))
    else:
        grid = (n_b, n_d)                                   # out-dim innermost
        x_specs = [pl.BlockSpec((tile_b, d), lambda b, j: (b, 0))
                   for d in d_list]
        r_specs = [pl.BlockSpec((d, tile_d), lambda b, j: (0, j))
                   for d in d_list]
        out_spec = pl.BlockSpec((tile_b, tile_d), lambda b, j: (b, j))

    vmem_limit = int(min(vmem_cap,
                         max(32 * 1024 * 1024,
                             vmem_budget_bytes + 16 * 1024 * 1024)))

    out = pl.pallas_call(
        kernel,
        out_shape=jax.ShapeDtypeStruct((Bp, Dp), out_dtype),
        grid_spec=pltpu.PrefetchScalarGridSpec(
            num_scalar_prefetch=0,
            grid=grid,
            in_specs=x_specs + r_specs,
            out_specs=out_spec,
        ),
        compiler_params=pltpu.CompilerParams(
            dimension_semantics=("parallel", "parallel"),
            vmem_limit_bytes=vmem_limit),
        cost_estimate=cost,
    )(*input_list, *random_matrices)

    if pad_b or pad_d:
        out = out[:B, :output_dim]
    return out


# ----------------------------------------------------------------------------
# Reference + tests
# ----------------------------------------------------------------------------
def _reference(input_list, random_matrices, output_dim):
    prods = [jnp.dot(x.astype(jnp.float32), r.astype(jnp.float32))
             for x, r in zip(input_list, random_matrices)]
    out = prods[0] / math.pow(float(output_dim), 1.0 / len(prods))
    for p in prods[1:]:
        out = out * p
    return out


if __name__ == "__main__":
    key = jax.random.PRNGKey(0)
    k1_mats, k1_ins, k2_mats, k2_ins = jax.random.split(key, 4)

    # ---- Test 1: small config, exact f32 semantics (no-grid VMEM fast path).
    # RandomLayer(input_dim_list=[32, 16], output_dim=256), batch=8.
    input_dim_list = [32, 16]
    output_dim = 256
    batch = 8

    mat_keys = jax.random.split(k1_mats, len(input_dim_list))
    random_matrices = prepare_random_matrices([
        jax.random.normal(mat_keys[i], (input_dim_list[i], output_dim),
                          dtype=jnp.float32)
        for i in range(len(input_dim_list))
    ])
    in_keys = jax.random.split(k1_ins, len(input_dim_list))
    input_list = [
        jax.random.normal(in_keys[i], (batch, input_dim_list[i]),
                          dtype=jnp.float32)
        for i in range(len(input_dim_list))
    ]

    out = random_layer_forward(input_list, random_matrices, output_dim)
    out = jax.block_until_ready(out)
    ref = _reference(input_list, random_matrices, output_dim)
    assert out.shape == (batch, output_dim)
    assert jnp.allclose(out, ref, atol=1e-4, rtol=1e-4), "f32 path mismatch"

    # ---- Test 2: tiled (grid) path, weight-resident order, bf16 operands
    # (weights pre-cast ONCE) with f32 accumulation.  Explicit tiles force the
    # grid: weights dominate -> grid=(output_dim/256, B/16) = (4, 2).
    input_dim_list2 = [64, 32]
    output_dim2 = 1024
    batch2 = 32

    mat_keys2 = jax.random.split(k2_mats, len(input_dim_list2))
    random_matrices2 = prepare_random_matrices([
        jax.random.normal(mat_keys2[i], (input_dim_list2[i], output_dim2),
                          dtype=jnp.float32)
        for i in range(len(input_dim_list2))
    ], dtype=jnp.bfloat16)                      # one-time low-precision copy
    in_keys2 = jax.random.split(k2_ins, len(input_dim_list2))
    input_list2 = [
        jax.random.normal(in_keys2[i], (batch2, input_dim_list2[i]),
                          dtype=jnp.float32)
        for i in range(len(input_dim_list2))
    ]

    out2 = random_layer_forward(
        input_list2, random_matrices2, output_dim2,
        inputs_dtype=jnp.bfloat16, tile_b=16, tile_d=256)
    out2 = jax.block_until_ready(out2)
    ref2 = _reference([x.astype(jnp.bfloat16) for x in input_list2],
                      random_matrices2, output_dim2)
    assert out2.shape == (batch2, output_dim2)
    assert jnp.allclose(out2, ref2, atol=5e-3, rtol=5e-3), "bf16 path mismatch"

    print("KERNEL_OK")
</pallas_src>

<mosaic_0001>
module attributes {stable_mosaic.version = 11 : i64} {
  func.func @_random_layer_kernel(%arg0: memref<8x32xf32, #tpu.memory_space<vmem>>, %arg1: memref<8x16xf32, #tpu.memory_space<vmem>>, %arg2: memref<32x256xf32, #tpu.memory_space<vmem>>, %arg3: memref<16x256xf32, #tpu.memory_space<vmem>>, %arg4: memref<8x256xf32, #tpu.memory_space<vmem>>) attributes {dimension_semantics = [], scalar_prefetch = 0 : i64, scratch_operands = 0 : i64, tpu.core_type = #tpu.core_type<tc>} {
    %c0 = arith.constant 0 : index
    %c0_0 = arith.constant 0 : index
    %0 = vector.load %arg0[%c0, %c0_0] : memref<8x32xf32, #tpu.memory_space<vmem>>, vector<8x32xf32>
    %c0_1 = arith.constant 0 : index
    %c0_2 = arith.constant 0 : index
    %1 = vector.load %arg2[%c0_1, %c0_2] : memref<32x256xf32, #tpu.memory_space<vmem>>, vector<32x256xf32>
    %cst = arith.constant dense<0.000000e+00> : vector<8x256xf32>
    %2 = tpu.matmul %0, %1, %cst {dimension_numbers = #tpu.dot_dimension_numbers<[1], [0], [0], [1], [0, 0, 1, 1], [], []>} : vector<8x32xf32>, vector<32x256xf32>, vector<8x256xf32> -> vector<8x256xf32>
    %cst_3 = arith.constant 6.250000e-02 : f32
    %3 = vector.broadcast %cst_3 : f32 to vector<8x256xf32>
    %4 = arith.mulf %2, %3 : vector<8x256xf32>
    %c0_4 = arith.constant 0 : index
    %c0_5 = arith.constant 0 : index
    %5 = vector.load %arg1[%c0_4, %c0_5] : memref<8x16xf32, #tpu.memory_space<vmem>>, vector<8x16xf32>
    %c0_6 = arith.constant 0 : index
    %c0_7 = arith.constant 0 : index
    %6 = vector.load %arg3[%c0_6, %c0_7] : memref<16x256xf32, #tpu.memory_space<vmem>>, vector<16x256xf32>
    %cst_8 = arith.constant dense<0.000000e+00> : vector<8x256xf32>
    %7 = tpu.matmul %5, %6, %cst_8 {dimension_numbers = #tpu.dot_dimension_numbers<[1], [0], [0], [1], [0, 0, 1, 1], [], []>} : vector<8x16xf32>, vector<16x256xf32>, vector<8x256xf32> -> vector<8x256xf32>
    %8 = arith.mulf %4, %7 : vector<8x256xf32>
    %c0_9 = arith.constant 0 : index
    %c0_10 = arith.constant 0 : index
    %9 = vector.load %arg4[%c0_9, %c0_10] : memref<8x256xf32, #tpu.memory_space<vmem>>, vector<8x256xf32>
    tpu.vector_store %arg4[%c0_9, %c0_10], %8 {strides = array<i32>} : memref<8x256xf32, #tpu.memory_space<vmem>>, vector<8x256xf32>,
    return
  }
}

</mosaic_0001>

<llo_original>
// kernel: tpu_custom_call.1
$region0: #{tpu_custom_call.1}
  #allocation0 [shape = 'u32[]', space=smem, size = 0x4, offset = 0x4, fixed_abs, tag = 'smem constant byte address 0x4 - core index']
  #allocation1 [shape = 'u32[72,128]{1,0:T(1,128)}', space=vmem, size = 0x9000, scoped, tag = 'internal scratch']
  %s0 = inlined_call_operand.hbm [shape: f32[8,32], index: 0, kind: input, shape index: {}]
  %s1 = inlined_call_operand.hbm [shape: f32[8,16], index: 1, kind: input, shape index: {}]
  %s2 = inlined_call_operand.hbm [shape: f32[32,256], index: 2, kind: input, shape index: {}]
  %s3 = inlined_call_operand.hbm [shape: f32[16,256], index: 3, kind: input, shape index: {}]
  %s4 = inlined_call_operand.hbm [shape: f32[8,256], index: 4, kind: output, shape index: {}]
  %s5 = sld [smem:[#allocation0]]
  $region42: #{tpu_custom_call.1} parent=0
    _
  %s7 = ssub.s32 1, %s5
  %s8 = scalar_select 0, %s7, %s5
  $region1: #{tpu_custom_call.1} parent=0
    #allocation2 [shape = 'u8[4096]{0}', space=vmem, size = 0x1000, scoped, tag = 'input window, operand 0, single buffered']
    #allocation3 [shape = 's32[1]{0}', space=sflag, size = 0x4, scoped, tag = 'scoped memory for tpu_custom_call.1']
    #allocation4 [shape = 's32[1]{0}', space=sflag, size = 0x4, scoped, tag = 'scoped memory for tpu_custom_call.1']
    #allocation5 [shape = 'u8[4096]{0}', space=vmem, size = 0x1000, scoped, tag = 'input window, operand 1, single buffered']
    #allocation6 [shape = 's32[1]{0}', space=sflag, size = 0x4, scoped, tag = 'scoped memory for tpu_custom_call.1']
    #allocation7 [shape = 'u8[32768]{0}', space=vmem, size = 0x8000, scoped, tag = 'input window, operand 2, single buffered']
    #allocation8 [shape = 'u8[16384]{0}', space=vmem, size = 0x4000, scoped, tag = 'input window, operand 3, single buffered']
    #allocation9 [shape = 's32[1]{0}', space=sflag, size = 0x4, scoped, tag = 'scoped memory for tpu_custom_call.1']
    #allocation10 [shape = 'u8[8192]{0}', space=vmem, size = 0x2000, scoped, tag = 'output window, operand 0, single buffered']
    %9 = vsyncpa [#allocation3], 0
    %10 = vsyncpa [#allocation6], 0
    %11 = vsyncpa [#allocation9], 0
    %12 = vsyncpa [#allocation4], 0
    // Predicated region
    $region2: #{tpu_custom_call.1} parent=1 // pred_check
      _
    $region3: #{tpu_custom_call.1} parent=1 // pred_check_branch
      %14 = sbr.rel (0) target = $region5
    $region4: #{tpu_custom_call.1} parent=1 // pred_region
      %16 = vsyncadd [#allocation3], 0
      %s18 = sshll.u32 %s0, 4
      %s19 = int_to_ptr.hbm [resolvable:$true] %s18
      %s20 = sshll.u32 [#allocation2], 4
      %s21 = int_to_ptr.vmem [resolvable:$true] %s20
      %23 = dma.hbm_to_vmem [thread:$0]  %s19, 128, %s21, [#allocation3]
    $region5: #{tpu_custom_call.1} parent=1 // pred_fallthru
      _
    // Predicated region
    $region6: #{tpu_custom_call.1} parent=1 // pred_check
      _
    $region7: #{tpu_custom_call.1} parent=1 // pred_check_branch
      %25 = sbr.rel (0) target = $region9
    $region8: #{tpu_custom_call.1} parent=1 // pred_region
      %27 = vsyncadd [#allocation6], 0
      %s29 = sshll.u32 %s1, 4
      %s30 = int_to_ptr.hbm [resolvable:$true] %s29
      %s31 = sshll.u32 [#allocation5], 4
      %s32 = int_to_ptr.vmem [resolvable:$true] %s31
      %34 = dma.hbm_to_vmem [thread:$0]  %s30, 128, %s32, [#allocation6]
    $region9: #{tpu_custom_call.1} parent=1 // pred_fallthru
      _
    // Predicated region
    $region10: #{tpu_custom_call.1} parent=1 // pred_check
      _
    $region11: #{tpu_custom_call.1} parent=1 // pred_check_branch
      %36 = sbr.rel (0) target = $region13
    $region12: #{tpu_custom_call.1} parent=1 // pred_region
      %38 = vsyncadd [#allocation6], 0
      %s39 = sshll.u32 %s2, 4
      %s40 = int_to_ptr.hbm [resolvable:$true] %s39
      %s41 = sshll.u32 [#allocation7], 4
      %s42 = int_to_ptr.vmem [resolvable:$true] %s41
      %47 = dma.hbm_to_vmem [thread:$0]  %s40, 1024, %s42, [#allocation6], 256, 256, 16
    $region13: #{tpu_custom_call.1} parent=1 // pred_fallthru
      _
    // Predicated region
    $region14: #{tpu_custom_call.1} parent=1 // pred_check
      _
    $region15: #{tpu_custom_call.1} parent=1 // pred_check_branch
      %49 = sbr.rel (0) target = $region17
    $region16: #{tpu_custom_call.1} parent=1 // pred_region
      %51 = vsyncadd [#allocation9], 0
      %s52 = sshll.u32 %s3, 4
      %s53 = int_to_ptr.hbm [resolvable:$true] %s52
      %s54 = sshll.u32 [#allocation8], 4
      %s55 = int_to_ptr.vmem [resolvable:$true] %s54
      %60 = dma.hbm_to_vmem [thread:$0]  %s53, 512, %s55, [#allocation9], 256, 256, 16
    $region17: #{tpu_custom_call.1} parent=1 // pred_fallthru
      _
    // Predicated region
    $region18: #{tpu_custom_call.1} parent=1 // pred_check
      _
    $region19: #{tpu_custom_call.1} parent=1 // pred_check_branch
      %62 = sbr.rel (0) target = $region21
    $region20: #{tpu_custom_call.1} parent=1 // pred_region
      %64 = dma.done [#allocation3], 128
    $region21: #{tpu_custom_call.1} parent=1 // pred_fallthru
      _
    // Predicated region
    $region22: #{tpu_custom_call.1} parent=1 // pred_check
      _
    $region23: #{tpu_custom_call.1} parent=1 // pred_check_branch
      %66 = sbr.rel (0) target = $region25
    $region24: #{tpu_custom_call.1} parent=1 // pred_region
      %68 = dma.done [#allocation6], 128
    $region25: #{tpu_custom_call.1} parent=1 // pred_fallthru
      _
    // Predicated region
    $region26: #{tpu_custom_call.1} parent=1 // pred_check
      _
    $region27: #{tpu_custom_call.1} parent=1 // pred_check_branch
      %70 = sbr.rel (0) target = $region29
    $region28: #{tpu_custom_call.1} parent=1 // pred_region
      %72 = dma.done [#allocation6], 1024
    $region29: #{tpu_custom_call.1} parent=1 // pred_fallthru
      _
    // Predicated region
    $region30: #{tpu_custom_call.1} parent=1 // pred_check
      _
    $region31: #{tpu_custom_call.1} parent=1 // pred_check_branch
      %74 = sbr.rel (0) target = $region33
    $region32: #{tpu_custom_call.1} parent=1 // pred_region
      %76 = dma.done [#allocation9], 512
    $region33: #{tpu_custom_call.1} parent=1 // pred_fallthru
      _
    %v77 = vld [vmem:[#allocation2] sm:$0xff]
    %v78 = vld [vmem:[#allocation7] sm:$0xff]
    %v79 = vld [vmem:[#allocation7 + $0x8] sm:$0xff]
    %v80 = vld [vmem:[#allocation7 + $0x10] sm:$0xff]
    %v81 = vld [vmem:[#allocation7 + $0x18] sm:$0xff]
    %v82 = vld [vmem:[#allocation7 + $0x20] sm:$0xff]
    %v83 = vld [vmem:[#allocation7 + $0x28] sm:$0xff]
    %v84 = vld [vmem:[#allocation7 + $0x30] sm:$0xff]
    %v85 = vld [vmem:[#allocation7 + $0x38] sm:$0xff]
    %vm86 = vcmask 261120
    %v88 = vsel %vm86, %v77, 0
    %90 = vmatpush.msra.mxu0 0.0
    %91 = vmatpush.msra.mxu0 0.0
    %92 = vmatpush.msra.mxu0 0.0
    %93 = vmatpush.msra.mxu0 0.0
    %94 = vmatpush.msra.mxu0 0.0
    %95 = vmatpush.msra.mxu0 0.0
    %96 = vmatpush.msra.mxu0 0.0
    %97 = vmatpush.msra.mxu0 0.0
    %98 = vmatpush.msra.mxu0 0.0
    %99 = vmatpush.msra.mxu0 0.0
    %100 = vmatpush.msra.mxu0 0.0
    %101 = vmatpush.msra.mxu0 0.0
    %102 = vmatpush.msra.mxu0 %v84
    %103 = vmatpush.msra.mxu0 %v82
    %104 = vmatpush.msra.mxu0 %v80
    %105 = vmatpush.msra.mxu0 %v78
    %106 = vmatmul.f32.gmra.mxu0 %v88
    %v107 = vpop.f32.mrf.mxu0
    %v108 = vadd.f32 0.0, %v107
    %109 = vdwg.mxu0
    %110 = vmatpush.msra.mxu0 0.0
    %111 = vmatpush.msra.mxu0 0.0
    %112 = vmatpush.msra.mxu0 0.0
    %113 = vmatpush.msra.mxu0 0.0
    %114 = vmatpush.msra.mxu0 0.0
    %115 = vmatpush.msra.mxu0 0.0
    %116 = vmatpush.msra.mxu0 0.0
    %117 = vmatpush.msra.mxu0 0.0
    %118 = vmatpush.msra.mxu0 0.0
    %119 = vmatpush.msra.mxu0 0.0
    %120 = vmatpush.msra.mxu0 0.0
    %121 = vmatpush.msra.mxu0 0.0
    %122 = vmatpush.msra.mxu0 %v85
    %123 = vmatpush.msra.mxu0 %v83
    %124 = vmatpush.msra.mxu0 %v81
    %125 = vmatpush.msra.mxu0 %v79
    %126 = vmatmul.f32.gmra.mxu0 %v88
    %v127 = vpop.f32.mrf.mxu0
    %v128 = vadd.f32 0.0, %v127
    %129 = vdwg.mxu0
    %v130 = vmul.f32 %v108, 0.0625
    %v131 = vmul.f32 %v128, 0.0625
    %v132 = vld [vmem:[#allocation5] sm:$0xff]
    %v133 = vld [vmem:[#allocation8] sm:$0xff]
    %v134 = vld [vmem:[#allocation8 + $0x8] sm:$0xff]
    %v135 = vld [vmem:[#allocation8 + $0x10] sm:$0xff]
    %v136 = vld [vmem:[#allocation8 + $0x18] sm:$0xff]
    %vm137 = vcmask 130048
    %v139 = vsel %vm137, %v132, 0
    %141 = vmatpush.msra.mxu0 0.0
    %142 = vmatpush.msra.mxu0 0.0
    %143 = vmatpush.msra.mxu0 0.0
    %144 = vmatpush.msra.mxu0 0.0
    %145 = vmatpush.msra.mxu0 0.0
    %146 = vmatpush.msra.mxu0 0.0
    %147 = vmatpush.msra.mxu0 0.0
    %148 = vmatpush.msra.mxu0 0.0
    %149 = vmatpush.msra.mxu0 0.0
    %150 = vmatpush.msra.mxu0 0.0
    %151 = vmatpush.msra.mxu0 0.0
    %152 = vmatpush.msra.mxu0 0.0
    %153 = vmatpush.msra.mxu0 0.0
    %154 = vmatpush.msra.mxu0 0.0
    %155 = vmatpush.msra.mxu0 %v135
    %156 = vmatpush.msra.mxu0 %v133
    %157 = vmatmul.f32.gmra.mxu0 %v139
    %v158 = vpop.f32.mrf.mxu0
    %v159 = vadd.f32 0.0, %v158
    %160 = vdwg.mxu0
    %161 = vmatpush.msra.mxu0 0.0
    %162 = vmatpush.msra.mxu0 0.0
    %163 = vmatpush.msra.mxu0 0.0
    %164 = vmatpush.msra.mxu0 0.0
    %165 = vmatpush.msra.mxu0 0.0
    %166 = vmatpush.msra.mxu0 0.0
    %167 = vmatpush.msra.mxu0 0.0
    %168 = vmatpush.msra.mxu0 0.0
    %169 = vmatpush.msra.mxu0 0.0
    %170 = vmatpush.msra.mxu0 0.0
    %171 = vmatpush.msra.mxu0 0.0
    %172 = vmatpush.msra.mxu0 0.0
    %173 = vmatpush.msra.mxu0 0.0
    %174 = vmatpush.msra.mxu0 0.0
    %175 = vmatpush.msra.mxu0 %v136
    %176 = vmatpush.msra.mxu0 %v134
    %177 = vmatmul.f32.gmra.mxu0 %v139
    %v178 = vpop.f32.mrf.mxu0
    %v179 = vadd.f32 0.0, %v178
    %180 = vdwg.mxu0
    %v181 = vmul.f32 %v130, %v159
    %v182 = vmul.f32 %v131, %v179
    %183 = vst [vmem:[#allocation10] sm:$0xff] %v181
    %184 = vst [vmem:[#allocation10 + $0x8] sm:$0xff] %v182
    // Predicated region
    $region34: #{tpu_custom_call.1} parent=1 // pred_check
      _
    $region35: #{tpu_custom_call.1} parent=1 // pred_check_branch
      %186 = sbr.rel (0) target = $region37
    $region36: #{tpu_custom_call.1} parent=1 // pred_region
      %188 = vsyncadd [#allocation4], 0
      %s190 = sshll.u32 [#allocation10], 4
      %s191 = int_to_ptr.vmem [resolvable:$true] %s190
      %s192 = sshll.u32 %s4, 4
      %s193 = int_to_ptr.hbm [resolvable:$true] %s192
      %195 = dma.vmem_to_hbm [thread:$0]  %s191, 256, %s193, [#allocation4]
    $region37: #{tpu_custom_call.1} parent=1 // pred_fallthru
      _
    // Predicated region
    $region38: #{tpu_custom_call.1} parent=1 // pred_check
      _
    $region39: #{tpu_custom_call.1} parent=1 // pred_check_branch
      %197 = sbr.rel (0) target = $region41
    $region40: #{tpu_custom_call.1} parent=1 // pred_region
      %199 = dma.done [#allocation4], 256
    $region41: #{tpu_custom_call.1} parent=1 // pred_fallthru
      _
    %200 = vsyncpa [#allocation3], 1
    %201 = vsyncpa [#allocation6], 1
    %202 = vsyncpa [#allocation9], 1
    %203 = vsyncpa [#allocation4], 1

</llo_original>
